<compile_context>
chip_gen: v5e
topology: v5e:2x2
jax: 0.10.0
libtpu: 0.0.40
codegen_flags: <defaults>
</compile_context>

<pallas_src>
import jax
import jax.numpy as jnp
from jax import lax
from jax.experimental import pallas as pl
from jax.experimental.pallas import tpu as pltpu

_LANES = 128


def _round_up(x, m):
    return ((x + m - 1) // m) * m


# ----------------------------------------------------------------------------
# Kernel A: general targets (one-hot or soft), lane-dense flattened layout.
# ----------------------------------------------------------------------------
def _ce_sum_kernel(x_ref, t_ref, out_ref):
    # x_ref / t_ref: (TR, 128) tiles of the flattened input / target streams.
    # out_ref: (1, 1) f32 accumulator; same output block for every grid step.
    @pl.when(pl.program_id(0) == 0)
    def _init():
        out_ref[...] = jnp.zeros_like(out_ref)

    x = x_ref[...].astype(jnp.float32)
    t = t_ref[...].astype(jnp.float32)
    clamped = jnp.clip(x, 1e-12, 1.0)               # torch.clamp(result, 1e-12, 1.0)
    out_ref[...] += jnp.sum(t * jnp.log(clamped))   # single fused reduction per tile


def cross_entropy_loss(input_probs, target, *, block_rows=4096):
    """General path: input (N, C) probabilities, target (N, C) one-hot or soft."""
    N, C = input_probs.shape
    assert target.shape == (N, C)

    total = N * C
    rows = _round_up(total, _LANES) // _LANES
    tr = _round_up(min(block_rows, _round_up(rows, 8)), 8)
    rows_pad = _round_up(rows, tr)
    padded_total = rows_pad * _LANES

    # Flatten to a lane-dense (rows, 128) view; the loss is a full elementwise
    # sum so reshaping both operands identically is exact.
    x = jnp.reshape(input_probs, (-1,))
    t = jnp.reshape(target, (-1,))
    if padded_total != total:
        # Pad: input 0 -> clamped to 1e-12 (finite log); target 0 -> contributes 0.
        x = jnp.pad(x, (0, padded_total - total))
        t = jnp.pad(t, (0, padded_total - total))
    x = jnp.reshape(x, (rows_pad, _LANES))
    t = jnp.reshape(t, (rows_pad, _LANES))

    num_tiles = rows_pad // tr
    out = pl.pallas_call(
        _ce_sum_kernel,
        out_shape=jax.ShapeDtypeStruct((1, 1), jnp.float32),
        grid_spec=pltpu.PrefetchScalarGridSpec(
            num_scalar_prefetch=0,
            grid=(num_tiles,),
            in_specs=[
                pl.BlockSpec((tr, _LANES), lambda i: (i, 0)),
                pl.BlockSpec((tr, _LANES), lambda i: (i, 0)),
            ],
            out_specs=pl.BlockSpec((1, 1), lambda i: (0, 0)),
        ),
        compiler_params=pltpu.CompilerParams(
            dimension_semantics=("arbitrary",),     # carried scalar accumulator
            vmem_limit_bytes=32 * 1024 * 1024,
        ),
    )(x, t)
    # mean over classes of per-class batch sums == total_sum / C ; then /100.
    return out[0, 0] / (C * 100.0)


# ----------------------------------------------------------------------------
# Kernel B: fast path for strictly one-hot targets given as int class labels.
# Streams only the probabilities (+ tiny int32 labels): ~half the HBM bytes.
# ----------------------------------------------------------------------------
def _ce_label_kernel(p_ref, lbl_ref, out_ref):
    @pl.when(pl.program_id(0) == 0)
    def _init():
        out_ref[...] = jnp.zeros_like(out_ref)

    probs = p_ref[...].astype(jnp.float32)          # (TN, C)
    labels = lbl_ref[...]                           # (TN, 1) int32; -1 == padded row
    tn, c = probs.shape

    clamped = jnp.clip(probs, 1e-12, 1.0)
    col = lax.broadcasted_iota(jnp.int32, (tn, c), 1)
    # Select the (already clamped) probability of the true class, then log:
    # only TN transcendentals instead of TN*C.
    picked = jnp.sum(jnp.where(col == labels, clamped, 0.0),
                     axis=-1, keepdims=True)        # (TN, 1)
    picked = jnp.clip(picked, 1e-12, 1.0)           # keep padded rows finite
    contrib = jnp.where(labels >= 0, jnp.log(picked), 0.0)
    out_ref[...] += jnp.sum(contrib)


def cross_entropy_loss_from_labels(input_probs, labels, *, max_block_rows=1024):
    """Fast path: one-hot targets given as integer labels (N,)."""
    N, C = input_probs.shape
    assert labels.shape == (N,)

    # Size the row tile so a probs tile stays ~<=4 MiB (Pallas double-buffers it).
    # TODO(synk): for extremely large C the class axis should be tiled as well.
    budget_rows = max(8, (4 * 1024 * 1024) // (C * 4))
    tn = min(_round_up(min(max_block_rows, budget_rows), 8), _round_up(N, 8))
    n_pad = _round_up(N, tn)

    if n_pad != N:
        input_probs = jnp.pad(input_probs, ((0, n_pad - N), (0, 0)))
        labels = jnp.pad(labels, (0, n_pad - N), constant_values=-1)
    labels2d = labels.astype(jnp.int32).reshape(n_pad, 1)

    num_tiles = n_pad // tn
    out = pl.pallas_call(
        _ce_label_kernel,
        out_shape=jax.ShapeDtypeStruct((1, 1), jnp.float32),
        grid_spec=pltpu.PrefetchScalarGridSpec(
            num_scalar_prefetch=0,
            grid=(num_tiles,),
            in_specs=[
                pl.BlockSpec((tn, C), lambda i: (i, 0)),
                pl.BlockSpec((tn, 1), lambda i: (i, 0)),
            ],
            out_specs=pl.BlockSpec((1, 1), lambda i: (0, 0)),
        ),
        compiler_params=pltpu.CompilerParams(
            dimension_semantics=("arbitrary",),
            vmem_limit_bytes=32 * 1024 * 1024,
        ),
    )(input_probs, labels2d)
    return out[0, 0] / (C * 100.0)


def _reference(input_probs, target):
    clamped = jnp.clip(input_probs.astype(jnp.float32), 1e-12, 1.0)
    per_class = jnp.sum(target.astype(jnp.float32) * jnp.log(clamped), axis=0)
    return jnp.mean(per_class) / 100.0


if __name__ == "__main__":
    key = jax.random.PRNGKey(0)
    k1, k2 = jax.random.split(key)

    N, C = 8, 32  # small demo: batch of 8 samples, 32 classes

    # Predicted class probabilities (rows sum to 1), deterministic.
    logits = jax.random.normal(k1, (N, C), dtype=jnp.float32)
    input_probs = jax.nn.softmax(logits, axis=-1)

    # Ground-truth labels and their one-hot encoding, deterministic.
    labels = jax.random.randint(k2, (N,), 0, C)
    target_onehot = jax.nn.one_hot(labels, C, dtype=jnp.float32)

    loss = jax.block_until_ready(cross_entropy_loss(input_probs, target_onehot))
    loss_fast = jax.block_until_ready(cross_entropy_loss_from_labels(input_probs, labels))

    ref = _reference(input_probs, target_onehot)
    assert jnp.allclose(loss, ref, rtol=1e-5, atol=1e-6), (loss, ref)
    assert jnp.allclose(loss_fast, ref, rtol=1e-5, atol=1e-6), (loss_fast, ref)

    print("KERNEL_OK")
</pallas_src>

<mosaic_0001>
module attributes {stable_mosaic.version = 11 : i64} {
  func.func @_ce_sum_kernel(%arg0: i32, %arg1: memref<8x128xf32, #tpu.memory_space<vmem>>, %arg2: memref<8x128xf32, #tpu.memory_space<vmem>>, %arg3: memref<1x1xf32, #tpu.memory_space<vmem>>) attributes {dimension_semantics = [#tpu.dimension_semantics<arbitrary>], iteration_bounds = array<i64: 1>, scalar_prefetch = 0 : i64, scratch_operands = 0 : i64, tpu.core_type = #tpu.core_type<tc>, window_params = [{transform_indices = @transform_0, window_bounds = array<i64: 8, 128>}, {transform_indices = @transform_1, window_bounds = array<i64: 8, 128>}, {pipeline_mode = #tpu.pipeline_mode<synchronous>, transform_indices = @transform_2, window_bounds = array<i64: 1, 1>}]} {
    %c0_i32 = arith.constant 0 : i32
    %0 = arith.cmpi eq, %arg0, %c0_i32 : i32
    %1 = arith.extui %0 : i1 to i32
    %c0_i32_0 = arith.constant 0 : i32
    %2 = arith.cmpi ne, %1, %c0_i32_0 : i32
    scf.if %2 {
      %cst_10 = arith.constant 0.000000e+00 : f32
      %19 = vector.broadcast %cst_10 : f32 to vector<1x1xf32>
      %c0_11 = arith.constant 0 : index
      %c0_12 = arith.constant 0 : index
      %20 = vector.load %arg3[%c0_11, %c0_12] : memref<1x1xf32, #tpu.memory_space<vmem>>, vector<1x1xf32>
      tpu.vector_store %arg3[%c0_11, %c0_12], %19 {strides = array<i32>} : memref<1x1xf32, #tpu.memory_space<vmem>>, vector<1x1xf32>,
    } else {
    }
    %c0 = arith.constant 0 : index
    %c0_1 = arith.constant 0 : index
    %3 = vector.load %arg1[%c0, %c0_1] : memref<8x128xf32, #tpu.memory_space<vmem>>, vector<8x128xf32>
    %c0_2 = arith.constant 0 : index
    %c0_3 = arith.constant 0 : index
    %4 = vector.load %arg2[%c0_2, %c0_3] : memref<8x128xf32, #tpu.memory_space<vmem>>, vector<8x128xf32>
    %cst = arith.constant 9.99999996E-13 : f32
    %cst_4 = arith.constant 1.000000e+00 : f32
    %5 = vector.broadcast %cst : f32 to vector<8x128xf32>
    %6 = arith.maximumf %5, %3 : vector<8x128xf32>
    %7 = vector.broadcast %cst_4 : f32 to vector<8x128xf32>
    %8 = arith.minimumf %7, %6 : vector<8x128xf32>
    %c0_5 = arith.constant 0 : index
    %c0_6 = arith.constant 0 : index
    %9 = vector.load %arg3[%c0_5, %c0_6] : memref<1x1xf32, #tpu.memory_space<vmem>>, vector<1x1xf32>
    %10 = math.log %8 : vector<8x128xf32>
    %11 = arith.mulf %4, %10 : vector<8x128xf32>
    %12 = vector.shape_cast %11 : vector<8x128xf32> to vector<1x8x128xf32>
    %cst_7 = arith.constant dense<0.000000e+00> : vector<1xf32>
    %13 = vector.multi_reduction <add>, %12, %cst_7 [1, 2] : vector<1x8x128xf32> to vector<1xf32>
    %14 = vector.shape_cast %13 : vector<1xf32> to vector<1x1x1xf32>
    %15 = vector.extract %14[0, 0, 0] : f32 from vector<1x1x1xf32>
    %16 = vector.broadcast %15 : f32 to vector<1x1xf32>
    %17 = arith.addf %9, %16 : vector<1x1xf32>
    %c0_8 = arith.constant 0 : index
    %c0_9 = arith.constant 0 : index
    %18 = vector.load %arg3[%c0_8, %c0_9] : memref<1x1xf32, #tpu.memory_space<vmem>>, vector<1x1xf32>
    tpu.vector_store %arg3[%c0_8, %c0_9], %17 {strides = array<i32>} : memref<1x1xf32, #tpu.memory_space<vmem>>, vector<1x1xf32>,
    return
  }
  func.func @transform_0(%arg0: i32) -> (i32, i32) {
    %c0_i32 = arith.constant 0 : i32
    %c0_i32_0 = arith.constant 0 : i32
    return %arg0, %c0_i32 : i32, i32
  }
  func.func @transform_1(%arg0: i32) -> (i32, i32) {
    %c0_i32 = arith.constant 0 : i32
    %c0_i32_0 = arith.constant 0 : i32
    return %arg0, %c0_i32 : i32, i32
  }
  func.func @transform_2(%arg0: i32) -> (i32, i32) {
    %c0_i32 = arith.constant 0 : i32
    %c0_i32_0 = arith.constant 0 : i32
    %c0_i32_1 = arith.constant 0 : i32
    return %c0_i32, %c0_i32_0 : i32, i32
  }
}

</mosaic_0001>

<llo_original>
// kernel: tpu_custom_call.1
$region0: #{tpu_custom_call.1}
  #allocation0 [shape = 'u32[]', space=smem, size = 0x4, offset = 0x4, fixed_abs, tag = 'smem constant byte address 0x4 - core index']
  #allocation1 [shape = 'u32[72,128]{1,0:T(1,128)}', space=vmem, size = 0x9000, scoped, tag = 'internal scratch']
  %s0 = inlined_call_operand.hbm [shape: f32[8,128], index: 0, kind: input, shape index: {}]
  %s1 = inlined_call_operand.hbm [shape: f32[8,128], index: 1, kind: input, shape index: {}]
  %s2 = inlined_call_operand.hbm [shape: f32[1,1], index: 2, kind: output, shape index: {}]
  %s3 = sld [smem:[#allocation0]]
  $region30: #{tpu_custom_call.1} parent=0
    _
  %s5 = ssub.s32 1, %s3
  %s6 = scalar_select 0, %s5, %s3
  $region1: #{tpu_custom_call.1} parent=0
    #allocation2 [shape = 'u8[4096]{0}', space=vmem, size = 0x1000, scoped, tag = 'input window, operand 0, single buffered']
    #allocation3 [shape = 's32[1]{0}', space=sflag, size = 0x4, scoped, tag = 'scoped memory for tpu_custom_call.1']
    #allocation4 [shape = 's32[1]{0}', space=sflag, size = 0x4, scoped, tag = 'scoped memory for tpu_custom_call.1']
    #allocation5 [shape = 'u8[4096]{0}', space=vmem, size = 0x1000, scoped, tag = 'input window, operand 1, single buffered']
    #allocation6 [shape = 's32[1]{0}', space=sflag, size = 0x4, scoped, tag = 'scoped memory for tpu_custom_call.1']
    #allocation7 [shape = 'u8[512]{0}', space=vmem, size = 0x400, scoped, tag = 'output window, operand 0, single buffered']
    %7 = vsyncpa [#allocation3], 0
    %8 = vsyncpa [#allocation6], 0
    %9 = vsyncpa [#allocation4], 0
    // Predicated region
    $region2: #{tpu_custom_call.1} parent=1 // pred_check
      _
    $region3: #{tpu_custom_call.1} parent=1 // pred_check_branch
      %11 = sbr.rel (0) target = $region5
    $region4: #{tpu_custom_call.1} parent=1 // pred_region
      %13 = vsyncadd [#allocation3], 0
      %s15 = sshll.u32 %s0, 4
      %s16 = int_to_ptr.hbm [resolvable:$true] %s15
      %s17 = sshll.u32 [#allocation2], 4
      %s18 = int_to_ptr.vmem [resolvable:$true] %s17
      %20 = dma.hbm_to_vmem [thread:$0]  %s16, 128, %s18, [#allocation3]
    $region5: #{tpu_custom_call.1} parent=1 // pred_fallthru
      _
    // Predicated region
    $region6: #{tpu_custom_call.1} parent=1 // pred_check
      _
    $region7: #{tpu_custom_call.1} parent=1 // pred_check_branch
      %22 = sbr.rel (0) target = $region9
    $region8: #{tpu_custom_call.1} parent=1 // pred_region
      %24 = vsyncadd [#allocation6], 0
      %s26 = sshll.u32 %s1, 4
      %s27 = int_to_ptr.hbm [resolvable:$true] %s26
      %s28 = sshll.u32 [#allocation5], 4
      %s29 = int_to_ptr.vmem [resolvable:$true] %s28
      %31 = dma.hbm_to_vmem [thread:$0]  %s27, 128, %s29, [#allocation6]
    $region9: #{tpu_custom_call.1} parent=1 // pred_fallthru
      _
    // Predicated region
    $region10: #{tpu_custom_call.1} parent=1 // pred_check
      _
    $region11: #{tpu_custom_call.1} parent=1 // pred_check_branch
      %33 = sbr.rel (0) target = $region13
    $region12: #{tpu_custom_call.1} parent=1 // pred_region
      %35 = dma.done [#allocation3], 128
    $region13: #{tpu_custom_call.1} parent=1 // pred_fallthru
      _
    // Predicated region
    $region14: #{tpu_custom_call.1} parent=1 // pred_check
      _
    $region15: #{tpu_custom_call.1} parent=1 // pred_check_branch
      %37 = sbr.rel (0) target = $region17
    $region16: #{tpu_custom_call.1} parent=1 // pred_region
      %39 = dma.done [#allocation6], 128
    $region17: #{tpu_custom_call.1} parent=1 // pred_fallthru
      _
    %p40 = scmp.eq.s32.totalorder 0, 0
    // Predicated region
    $region18: #{tpu_custom_call.1} parent=1 // pred_check
      %p41 = pneg %p40
    $region19: #{tpu_custom_call.1} parent=1 // pred_check_branch
      %43 = sbr.rel (%p41) target = $region21
    $region20: #{tpu_custom_call.1} parent=1 // pred_region
      %vm44 = vcmask 0
      %45 = vst.msk [vmem:[#allocation7] sm:$0x1] %vm44, 0.0
    $region21: #{tpu_custom_call.1} parent=1 // pred_fallthru
      _
    %v46 = vld [vmem:[#allocation2] sm:$0xff]
    %v47 = vld [vmem:[#allocation5] sm:$0xff]
    %v48 = vmax.f32 %v46, 1e-12
    %v49 = vmin.f32 %v48, 1.0
    %v50 = vld [vmem:[#allocation7] sm:$0x1]
    %v51 = vlog2.pop %v49
    %v52 = vmul.f32 %v51, 0.6931472
    %v53 = vmul.f32 %v47, %v52
    %54 = vadd.xlane.f32.xlu0 %v53
    %v55 = vpop.xlane.xlu0 %54
    %v56 = vrot.slane %v55, 4
    %v57 = vadd.f32 %v55, %v56
    %v58 = vrot.slane %v57, 2
    %v59 = vadd.f32 %v57, %v58
    %v60 = vrot.slane %v59, 1
    %v61 = vadd.f32 %v59, %v60
    %s62 = vtos %v61
    %v63 = vstv %s62
    %v64 = vadd.f32 %v50, %v63
    %vm65 = vcmask 0
    %66 = vst.msk [vmem:[#allocation7] sm:$0x1] %vm65, %v64
    // Predicated region
    $region22: #{tpu_custom_call.1} parent=1 // pred_check
      _
    $region23: #{tpu_custom_call.1} parent=1 // pred_check_branch
      %68 = sbr.rel (0) target = $region25
    $region24: #{tpu_custom_call.1} parent=1 // pred_region
      %70 = vsyncadd [#allocation4], 0
      %s72 = sshll.u32 [#allocation7], 4
      %s73 = int_to_ptr.vmem [resolvable:$true] %s72
      %s74 = sshll.u32 %s2, 4
      %s75 = int_to_ptr.hbm [resolvable:$true] %s74
      %77 = dma.vmem_to_hbm [thread:$0]  %s73, 16, %s75, [#allocation4]
    $region25: #{tpu_custom_call.1} parent=1 // pred_fallthru
      _
    // Predicated region
    $region26: #{tpu_custom_call.1} parent=1 // pred_check
      _
    $region27: #{tpu_custom_call.1} parent=1 // pred_check_branch
      %79 = sbr.rel (0) target = $region29
    $region28: #{tpu_custom_call.1} parent=1 // pred_region
      %81 = dma.done [#allocation4], 16
    $region29: #{tpu_custom_call.1} parent=1 // pred_fallthru
      _
    %82 = vsyncpa [#allocation3], 1
    %83 = vsyncpa [#allocation6], 1
    %84 = vsyncpa [#allocation4], 1

</llo_original>
